<compile_context>
chip_gen: v6e
topology: v6e:2x2x1
jax: 0.10.0
libtpu: 0.0.40
codegen_flags: <defaults>
</compile_context>

<pallas_src>
import functools

import jax
import jax.numpy as jnp
from jax.experimental import pallas as pl
from jax.experimental.pallas import tpu as pltpu

# Layer widths of the PyTorch module.
_H1, _H2, _H3, _OUT = 16, 8, 4, 1
_LANES = 128          # vreg lane width; layer-1 output padded to this for the aligned transpose
_SUB = 8              # vreg sublane width; layers 2-4 padded to this many rows

# Batch-tile bounds.  At tm=8192 the in-kernel footprint (double-buffered x tiles,
# h1 and h1^T temporaries, narrow transposed activations, lane-dense out rows) is
# ~16 MB, comfortably inside the raised 48 MiB scoped-VMEM limit on v5e/v6e/v7x.
_MAX_TM = 8192
_MIN_TM = 256


def _round_up(x, m):
    return ((x + m - 1) // m) * m


def _pick_tm(batch, requested):
    """Batch-aware tile size.

    Always a multiple of 128 (satisfies the sublane rule for the x block and the
    lane rule for the output row block).  By default aims for ~2 grid steps so
    v7x's two TensorCores both get work, capped at _MAX_TM rows per step so huge
    batches still pipeline HBM traffic behind compute.
    """
    if requested is not None:
        tm = _round_up(max(int(requested), 1), _LANES)
    else:
        tm = _round_up(max(pl.cdiv(batch, 2), 1), _LANES)
        tm = max(_MIN_TM, min(_MAX_TM, tm))
    # Never larger than the lane-rounded batch (no point computing pure padding).
    return min(tm, _round_up(batch, _LANES))


def _mlp_kernel(x_ref,
                w1_ref, b1_ref,
                w2_ref, b2_ref,
                w3_ref, b3_ref,
                w4_ref, b4_ref,
                o_ref):
    # ---- layer 1: batch-major (batch rows on MXU sublanes) -------------------
    # (tm, D) @ (D, 128) -> (tm, 128).  Columns >= 16 are exactly zero because the
    # weight/bias padding is zero, and stay zero through the ReLU.
    h1 = jnp.dot(x_ref[...], w1_ref[...], preferred_element_type=jnp.float32)
    h1 = jnp.maximum(h1 + b1_ref[...], 0.0)

    # ---- switch to feature-major: batch -> lanes ------------------------------
    # Aligned (tm, 128) -> (128, tm) transpose on the XLU.  From here on the batch
    # dimension is lane-dense: layers 2-4 stream it through the MXU's 256-wide
    # column dimension (cheap) and the final store is an unmasked lane-dense row.
    h1t = jnp.transpose(h1)                                                  # (128, tm)

    h2t = jnp.maximum(
        jnp.dot(w2_ref[...], h1t, preferred_element_type=jnp.float32) + b2_ref[...],
        0.0)                                                                 # (8, tm)
    h3t = jnp.maximum(
        jnp.dot(w3_ref[...], h2t, preferred_element_type=jnp.float32) + b3_ref[...],
        0.0)                                                                 # (8, tm), rows >=4 are zero
    logits = (jnp.dot(w4_ref[...], h3t, preferred_element_type=jnp.float32)
              + b4_ref[...])                                                 # (1, tm)

    o_ref[...] = logits.astype(o_ref.dtype)


def _prep_weights(params, input_dim, dtype=jnp.float32):
    """Pad / transpose the tiny parameter tensors (once per call, ~KBs) into the
    layouts the kernel expects.  Padding is with zeros so the math is unchanged."""
    w1p = jnp.zeros((input_dim, _LANES), dtype).at[:, :_H1].set(params["w1"])
    b1p = jnp.zeros((1, _LANES), dtype).at[:, :_H1].set(params["b1"])
    w2t = jnp.zeros((_SUB, _LANES), dtype).at[:_H2, :_H1].set(params["w2"].T)
    b2t = jnp.zeros((_SUB, 1), dtype).at[:_H2, :].set(params["b2"].T)
    w3t = jnp.zeros((_SUB, _SUB), dtype).at[:_H3, :_H2].set(params["w3"].T)
    b3t = jnp.zeros((_SUB, 1), dtype).at[:_H3, :].set(params["b3"].T)
    w4t = jnp.zeros((1, _SUB), dtype).at[:, :_H3].set(params["w4"].T)
    b4t = params["b4"].reshape(1, 1).astype(dtype)
    return (w1p, b1p, w2t, b2t, w3t, b3t, w4t, b4t)


@functools.partial(jax.jit, static_argnames=("tm",))
def fire_alarm_classifier(x, params, *, tm=None):
    """Forward pass of FireAlarmClassifier as a batch-tiled fused Pallas kernel.

    x: (batch, input_dim) float32
    params: dict with w1..w4 in (in, out) layout and b1..b4 as (1, out)
    returns: (batch, 1) float32 logits
    """
    batch, input_dim = x.shape
    tile = _pick_tm(batch, tm)
    grid = (pl.cdiv(batch, tile),)

    weights = _prep_weights(params, input_dim)

    # x tiles march along the batch axis; the output is a lane-dense (1, batch)
    # row tiled along lanes; weights/biases are VMEM-resident (constant index_map).
    x_spec = pl.BlockSpec((tile, input_dim), lambda i: (i, 0))
    out_spec = pl.BlockSpec((1, tile), lambda i: (0, i))

    def resident(a):
        return pl.BlockSpec(a.shape, lambda i: (0, 0))

    out_row = pl.pallas_call(
        _mlp_kernel,
        out_shape=jax.ShapeDtypeStruct((1, batch), jnp.float32),
        grid=grid,
        in_specs=[x_spec] + [resident(a) for a in weights],
        out_specs=out_spec,
        compiler_params=pltpu.CompilerParams(
            dimension_semantics=("parallel",),      # shard grid steps across v7x's 2 TCs
            vmem_limit_bytes=48 * 1024 * 1024,      # > v5e/v6e defaults, < v7x 64 MiB physical
        ),
    )(x, *weights)

    # (1, batch) row -> (batch, 1) column; pure metadata reshape in XLA.
    return out_row.reshape(batch, 1)


def init_params(key, input_dim):
    """Deterministic init matching nn.Linear shapes (weights stored as (in, out))."""
    dims = [(input_dim, _H1), (_H1, _H2), (_H2, _H3), (_H3, _OUT)]
    params = {}
    for i, (din, dout) in enumerate(dims, start=1):
        key, kw, kb = jax.random.split(key, 3)
        bound = 1.0 / jnp.sqrt(din)  # PyTorch default uniform bound
        params[f"w{i}"] = jax.random.uniform(kw, (din, dout), jnp.float32, -bound, bound)
        params[f"b{i}"] = jax.random.uniform(kb, (1, dout), jnp.float32, -bound, bound)
    return params


def reference_forward(x, params):
    h = jnp.maximum(x @ params["w1"] + params["b1"], 0.0)
    h = jnp.maximum(h @ params["w2"] + params["b2"], 0.0)
    h = jnp.maximum(h @ params["w3"] + params["b3"], 0.0)
    return h @ params["w4"] + params["b4"]


# TODO(synk): BCEWithLogitsLoss / Adam from the PyTorch module are training-only and
# are not implemented here (forward pass only).

if __name__ == "__main__":
    key = jax.random.PRNGKey(0)
    input_dim = 32
    k_x1, k_x2, k_p = jax.random.split(key, 3)
    params = init_params(k_p, input_dim)

    # Small single-tile case (tile rounds up to 128; ragged rows handled by
    # partial-block masking, no wrapper-side padding).
    x_small = jax.random.normal(k_x1, (8, input_dim), jnp.float32)
    out_small = jax.block_until_ready(fire_alarm_classifier(x_small, params))
    ref_small = reference_forward(x_small, params)
    assert out_small.shape == (8, 1)
    assert jnp.allclose(out_small, ref_small, atol=5e-5, rtol=5e-5)

    # Ragged batch, default batch-aware tile -> 2 grid steps with a partial
    # boundary block (exercises pipelining + OOB-masked reads/writes).
    x_big = jax.random.normal(k_x2, (2050, input_dim), jnp.float32)
    ref_big = reference_forward(x_big, params)
    out_big = jax.block_until_ready(fire_alarm_classifier(x_big, params))
    assert out_big.shape == (2050, 1)
    assert jnp.allclose(out_big, ref_big, atol=5e-5, rtol=5e-5)

    # Explicit small tile -> 5 grid steps (multi-step pipelining path).
    out_tiled = jax.block_until_ready(fire_alarm_classifier(x_big, params, tm=512))
    assert out_tiled.shape == (2050, 1)
    assert jnp.allclose(out_tiled, ref_big, atol=5e-5, rtol=5e-5)

    print("KERNEL_OK")
</pallas_src>

<mosaic_0001>
module attributes {stable_mosaic.version = 11 : i64} {
  func.func @_mlp_kernel(%arg0: i32, %arg1: memref<128x32xf32, #tpu.memory_space<vmem>>, %arg2: memref<32x128xf32, #tpu.memory_space<vmem>>, %arg3: memref<1x128xf32, #tpu.memory_space<vmem>>, %arg4: memref<8x128xf32, #tpu.memory_space<vmem>>, %arg5: memref<8x1xf32, #tpu.memory_space<vmem>>, %arg6: memref<8x8xf32, #tpu.memory_space<vmem>>, %arg7: memref<8x1xf32, #tpu.memory_space<vmem>>, %arg8: memref<1x8xf32, #tpu.memory_space<vmem>>, %arg9: memref<1x1xf32, #tpu.memory_space<vmem>>, %arg10: memref<1x128xf32, #tpu.memory_space<vmem>>) attributes {dimension_semantics = [#tpu.dimension_semantics<parallel>], iteration_bounds = array<i64: 1>, scalar_prefetch = 0 : i64, scratch_operands = 0 : i64, tpu.core_type = #tpu.core_type<tc>, window_params = [{transform_indices = @transform_0, window_bounds = array<i64: 128, 32>}, {pipeline_mode = #tpu.pipeline_mode<synchronous>, transform_indices = @transform_1, window_bounds = array<i64: 32, 128>}, {pipeline_mode = #tpu.pipeline_mode<synchronous>, transform_indices = @transform_2, window_bounds = array<i64: 1, 128>}, {pipeline_mode = #tpu.pipeline_mode<synchronous>, transform_indices = @transform_3, window_bounds = array<i64: 8, 128>}, {pipeline_mode = #tpu.pipeline_mode<synchronous>, transform_indices = @transform_4, window_bounds = array<i64: 8, 1>}, {pipeline_mode = #tpu.pipeline_mode<synchronous>, transform_indices = @transform_5, window_bounds = array<i64: 8, 8>}, {pipeline_mode = #tpu.pipeline_mode<synchronous>, transform_indices = @transform_6, window_bounds = array<i64: 8, 1>}, {pipeline_mode = #tpu.pipeline_mode<synchronous>, transform_indices = @transform_7, window_bounds = array<i64: 1, 8>}, {pipeline_mode = #tpu.pipeline_mode<synchronous>, transform_indices = @transform_8, window_bounds = array<i64: 1, 1>}, {transform_indices = @transform_9, window_bounds = array<i64: 1, 128>}]} {
    %c0 = arith.constant 0 : index
    %c0_0 = arith.constant 0 : index
    %0 = vector.load %arg1[%c0, %c0_0] : memref<128x32xf32, #tpu.memory_space<vmem>>, vector<128x32xf32>
    %c0_1 = arith.constant 0 : index
    %c0_2 = arith.constant 0 : index
    %1 = vector.load %arg2[%c0_1, %c0_2] : memref<32x128xf32, #tpu.memory_space<vmem>>, vector<32x128xf32>
    %cst = arith.constant dense<0.000000e+00> : vector<128x128xf32>
    %2 = tpu.matmul %0, %1, %cst {dimension_numbers = #tpu.dot_dimension_numbers<[1], [0], [0], [1], [0, 0, 1, 1], [], []>} : vector<128x32xf32>, vector<32x128xf32>, vector<128x128xf32> -> vector<128x128xf32>
    %c0_3 = arith.constant 0 : index
    %c0_4 = arith.constant 0 : index
    %3 = vector.load %arg3[%c0_3, %c0_4] : memref<1x128xf32, #tpu.memory_space<vmem>>, vector<1x128xf32>
    %4 = vector.broadcast %3 : vector<1x128xf32> to vector<128x128xf32>
    %5 = arith.addf %2, %4 : vector<128x128xf32>
    %cst_5 = arith.constant 0.000000e+00 : f32
    %6 = vector.broadcast %cst_5 : f32 to vector<128x128xf32>
    %7 = arith.maximumf %5, %6 : vector<128x128xf32>
    %8 = tpu.transpose %7, [1, 0] : vector<128x128xf32> -> vector<128x128xf32>
    %c0_6 = arith.constant 0 : index
    %c0_7 = arith.constant 0 : index
    %9 = vector.load %arg4[%c0_6, %c0_7] : memref<8x128xf32, #tpu.memory_space<vmem>>, vector<8x128xf32>
    %cst_8 = arith.constant dense<0.000000e+00> : vector<8x128xf32>
    %10 = tpu.matmul %9, %8, %cst_8 {dimension_numbers = #tpu.dot_dimension_numbers<[1], [0], [0], [1], [0, 0, 1, 1], [], []>} : vector<8x128xf32>, vector<128x128xf32>, vector<8x128xf32> -> vector<8x128xf32>
    %c0_9 = arith.constant 0 : index
    %c0_10 = arith.constant 0 : index
    %11 = vector.load %arg5[%c0_9, %c0_10] : memref<8x1xf32, #tpu.memory_space<vmem>>, vector<8x1xf32>
    %12 = vector.broadcast %11 : vector<8x1xf32> to vector<8x128xf32>
    %13 = arith.addf %10, %12 : vector<8x128xf32>
    %cst_11 = arith.constant 0.000000e+00 : f32
    %14 = vector.broadcast %cst_11 : f32 to vector<8x128xf32>
    %15 = arith.maximumf %13, %14 : vector<8x128xf32>
    %c0_12 = arith.constant 0 : index
    %c0_13 = arith.constant 0 : index
    %16 = vector.load %arg6[%c0_12, %c0_13] : memref<8x8xf32, #tpu.memory_space<vmem>>, vector<8x8xf32>
    %cst_14 = arith.constant dense<0.000000e+00> : vector<8x128xf32>
    %17 = tpu.matmul %16, %15, %cst_14 {dimension_numbers = #tpu.dot_dimension_numbers<[1], [0], [0], [1], [0, 0, 1, 1], [], []>} : vector<8x8xf32>, vector<8x128xf32>, vector<8x128xf32> -> vector<8x128xf32>
    %c0_15 = arith.constant 0 : index
    %c0_16 = arith.constant 0 : index
    %18 = vector.load %arg7[%c0_15, %c0_16] : memref<8x1xf32, #tpu.memory_space<vmem>>, vector<8x1xf32>
    %19 = vector.broadcast %18 : vector<8x1xf32> to vector<8x128xf32>
    %20 = arith.addf %17, %19 : vector<8x128xf32>
    %cst_17 = arith.constant 0.000000e+00 : f32
    %21 = vector.broadcast %cst_17 : f32 to vector<8x128xf32>
    %22 = arith.maximumf %20, %21 : vector<8x128xf32>
    %c0_18 = arith.constant 0 : index
    %c0_19 = arith.constant 0 : index
    %23 = vector.load %arg8[%c0_18, %c0_19] : memref<1x8xf32, #tpu.memory_space<vmem>>, vector<1x8xf32>
    %cst_20 = arith.constant dense<0.000000e+00> : vector<1x128xf32>
    %24 = tpu.matmul %23, %22, %cst_20 {dimension_numbers = #tpu.dot_dimension_numbers<[1], [0], [0], [1], [0, 0, 1, 1], [], []>} : vector<1x8xf32>, vector<8x128xf32>, vector<1x128xf32> -> vector<1x128xf32>
    %c0_21 = arith.constant 0 : index
    %c0_22 = arith.constant 0 : index
    %25 = vector.load %arg9[%c0_21, %c0_22] : memref<1x1xf32, #tpu.memory_space<vmem>>, vector<1x1xf32>
    %26 = vector.broadcast %25 : vector<1x1xf32> to vector<1x128xf32>
    %27 = arith.addf %24, %26 : vector<1x128xf32>
    %c0_23 = arith.constant 0 : index
    %c0_24 = arith.constant 0 : index
    %28 = vector.load %arg10[%c0_23, %c0_24] : memref<1x128xf32, #tpu.memory_space<vmem>>, vector<1x128xf32>
    tpu.vector_store %arg10[%c0_23, %c0_24], %27 {strides = array<i32>} : memref<1x128xf32, #tpu.memory_space<vmem>>, vector<1x128xf32>,
    return
  }
  func.func @transform_0(%arg0: i32) -> (i32, i32) {
    %c0_i32 = arith.constant 0 : i32
    %c0_i32_0 = arith.constant 0 : i32
    return %arg0, %c0_i32 : i32, i32
  }
  func.func @transform_1(%arg0: i32) -> (i32, i32) {
    %c0_i32 = arith.constant 0 : i32
    %c0_i32_0 = arith.constant 0 : i32
    %c0_i32_1 = arith.constant 0 : i32
    return %c0_i32, %c0_i32_0 : i32, i32
  }
  func.func @transform_2(%arg0: i32) -> (i32, i32) {
    %c0_i32 = arith.constant 0 : i32
    %c0_i32_0 = arith.constant 0 : i32
    %c0_i32_1 = arith.constant 0 : i32
    return %c0_i32, %c0_i32_0 : i32, i32
  }
  func.func @transform_3(%arg0: i32) -> (i32, i32) {
    %c0_i32 = arith.constant 0 : i32
    %c0_i32_0 = arith.constant 0 : i32
    %c0_i32_1 = arith.constant 0 : i32
    return %c0_i32, %c0_i32_0 : i32, i32
  }
  func.func @transform_4(%arg0: i32) -> (i32, i32) {
    %c0_i32 = arith.constant 0 : i32
    %c0_i32_0 = arith.constant 0 : i32
    %c0_i32_1 = arith.constant 0 : i32
    return %c0_i32, %c0_i32_0 : i32, i32
  }
  func.func @transform_5(%arg0: i32) -> (i32, i32) {
    %c0_i32 = arith.constant 0 : i32
    %c0_i32_0 = arith.constant 0 : i32
    %c0_i32_1 = arith.constant 0 : i32
    return %c0_i32, %c0_i32_0 : i32, i32
  }
  func.func @transform_6(%arg0: i32) -> (i32, i32) {
    %c0_i32 = arith.constant 0 : i32
    %c0_i32_0 = arith.constant 0 : i32
    %c0_i32_1 = arith.constant 0 : i32
    return %c0_i32, %c0_i32_0 : i32, i32
  }
  func.func @transform_7(%arg0: i32) -> (i32, i32) {
    %c0_i32 = arith.constant 0 : i32
    %c0_i32_0 = arith.constant 0 : i32
    %c0_i32_1 = arith.constant 0 : i32
    return %c0_i32, %c0_i32_0 : i32, i32
  }
  func.func @transform_8(%arg0: i32) -> (i32, i32) {
    %c0_i32 = arith.constant 0 : i32
    %c0_i32_0 = arith.constant 0 : i32
    %c0_i32_1 = arith.constant 0 : i32
    return %c0_i32, %c0_i32_0 : i32, i32
  }
  func.func @transform_9(%arg0: i32) -> (i32, i32) {
    %c0_i32 = arith.constant 0 : i32
    %c0_i32_0 = arith.constant 0 : i32
    return %c0_i32, %arg0 : i32, i32
  }
}

</mosaic_0001>

<llo_original>
// kernel: fire_alarm_classifier.1
$region0: #{fire_alarm_classifier.1}
  #allocation0 [shape = 'u32[]', space=smem, size = 0x4, offset = 0x4, fixed_abs, tag = 'smem constant byte address 0x4 - core index']
  #allocation1 [shape = 'u32[144,128]{1,0:T(1,128)}', space=vmem, size = 0x12000, scoped, tag = 'internal scratch']
  #allocation2 [shape = 'f32[1,1]{1,0:T(1,128)S(1)}', space=vmem, size = 0x200, scoped, tag = 'scoped memory for fire_alarm_classifier.1']
  %s0 = inlined_call_operand.vmem [shape: f32[8,32], index: 0, kind: input, shape index: {}]
  %s1 = inlined_call_operand.vmem [shape: f32[32,128], index: 1, kind: input, shape index: {}]
  %s2 = inlined_call_operand.vmem [shape: f32[1,128], index: 2, kind: input, shape index: {}]
  %s3 = inlined_call_operand.vmem [shape: f32[8,128], index: 3, kind: input, shape index: {}]
  %s4 = inlined_call_operand.vmem [shape: f32[8,1], index: 4, kind: input, shape index: {}]
  %s5 = inlined_call_operand.vmem [shape: f32[8,8], index: 5, kind: input, shape index: {}]
  %s6 = inlined_call_operand.vmem [shape: f32[8,1], index: 6, kind: input, shape index: {}]
  %s7 = inlined_call_operand.vmem [shape: f32[1,8], index: 7, kind: input, shape index: {}]
  %s8 = inlined_call_operand.<no memory space> [shape: f32[1,1], index: 8, kind: input, shape index: {}]
  %s9 = inlined_call_operand.hbm [shape: f32[1,8], index: 9, kind: output, shape index: {}]
  %s10 = sld [smem:[#allocation0]]
  $region46: #{fire_alarm_classifier.1} parent=0
    _
  %s12 = ssub.s32 1, %s10
  %s13 = scalar_select 0, %s12, %s10
  %v14 = vstv %s8
  %15 = vst [vmem:[#allocation2] sm:$0x1] %v14
  $region1: #{fire_alarm_classifier.1} parent=0
    #allocation3 [shape = 'u8[512]{0}', space=vmem, size = 0x400, scoped, tag = 'output window, operand 0, single buffered']
    #allocation4 [shape = 's32[1]{0}', space=sflag, size = 0x4, scoped, tag = 'scoped memory for fire_alarm_classifier.1']
    %16 = vsyncpa [#allocation4], 0
    // Predicated region
    $region2: #{fire_alarm_classifier.1} parent=1 // pred_check
      _
    $region3: #{fire_alarm_classifier.1} parent=1 // pred_check_branch
      %18 = sbr.rel (0) target = $region5
    $region4: #{fire_alarm_classifier.1} parent=1 // pred_region
      _
    $region5: #{fire_alarm_classifier.1} parent=1 // pred_fallthru
      _
    // Predicated region
    $region6: #{fire_alarm_classifier.1} parent=1 // pred_check
      _
    $region7: #{fire_alarm_classifier.1} parent=1 // pred_check_branch
      %20 = sbr.rel (0) target = $region9
    $region8: #{fire_alarm_classifier.1} parent=1 // pred_region
      _
    $region9: #{fire_alarm_classifier.1} parent=1 // pred_fallthru
      _
    // Predicated region
    $region10: #{fire_alarm_classifier.1} parent=1 // pred_check
      _
    $region11: #{fire_alarm_classifier.1} parent=1 // pred_check_branch
      %22 = sbr.rel (0) target = $region13
    $region12: #{fire_alarm_classifier.1} parent=1 // pred_region
      _
    $region13: #{fire_alarm_classifier.1} parent=1 // pred_fallthru
      _
    // Predicated region
    $region14: #{fire_alarm_classifier.1} parent=1 // pred_check
      _
    $region15: #{fire_alarm_classifier.1} parent=1 // pred_check_branch
      %24 = sbr.rel (0) target = $region17
    $region16: #{fire_alarm_classifier.1} parent=1 // pred_region
      _
    $region17: #{fire_alarm_classifier.1} parent=1 // pred_fallthru
      _
    // Predicated region
    $region18: #{fire_alarm_classifier.1} parent=1 // pred_check
      _
    $region19: #{fire_alarm_classifier.1} parent=1 // pred_check_branch
      %26 = sbr.rel (0) target = $region21
    $region20: #{fire_alarm_classifier.1} parent=1 // pred_region
      _
    $region21: #{fire_alarm_classifier.1} parent=1 // pred_fallthru
      _
    // Predicated region
    $region22: #{fire_alarm_classifier.1} parent=1 // pred_check
      _
    $region23: #{fire_alarm_classifier.1} parent=1 // pred_check_branch
      %28 = sbr.rel (0) target = $region25
    $region24: #{fire_alarm_classifier.1} parent=1 // pred_region
      _
    $region25: #{fire_alarm_classifier.1} parent=1 // pred_fallthru
      _
    // Predicated region
    $region26: #{fire_alarm_classifier.1} parent=1 // pred_check
      _
    $region27: #{fire_alarm_classifier.1} parent=1 // pred_check_branch
      %30 = sbr.rel (0) target = $region29
    $region28: #{fire_alarm_classifier.1} parent=1 // pred_region
      _
    $region29: #{fire_alarm_classifier.1} parent=1 // pred_fallthru
      _
    // Predicated region
    $region30: #{fire_alarm_classifier.1} parent=1 // pred_check
      _
    $region31: #{fire_alarm_classifier.1} parent=1 // pred_check_branch
      %32 = sbr.rel (0) target = $region33
    $region32: #{fire_alarm_classifier.1} parent=1 // pred_region
      _
    $region33: #{fire_alarm_classifier.1} parent=1 // pred_fallthru
      _
    // Predicated region
    $region34: #{fire_alarm_classifier.1} parent=1 // pred_check
      _
    $region35: #{fire_alarm_classifier.1} parent=1 // pred_check_branch
      %34 = sbr.rel (0) target = $region37
    $region36: #{fire_alarm_classifier.1} parent=1 // pred_region
      _
    $region37: #{fire_alarm_classifier.1} parent=1 // pred_fallthru
      _
    %v35 = vld [vmem:[%s0] sm:$0xff]
    %v36 = vld [vmem:[%s0 + $0x8] sm:$0xff]
    %v37 = vld [vmem:[%s0 + $0x10] sm:$0xff]
    %v38 = vld [vmem:[%s0 + $0x18] sm:$0xff]
    %v39 = vld [vmem:[%s0 + $0x20] sm:$0xff]
    %v40 = vld [vmem:[%s0 + $0x28] sm:$0xff]
    %v41 = vld [vmem:[%s0 + $0x30] sm:$0xff]
    %v42 = vld [vmem:[%s0 + $0x38] sm:$0xff]
    %v43 = vld [vmem:[%s0 + $0x40] sm:$0xff]
    %v44 = vld [vmem:[%s0 + $0x48] sm:$0xff]
    %v45 = vld [vmem:[%s0 + $0x50] sm:$0xff]
    %v46 = vld [vmem:[%s0 + $0x58] sm:$0xff]
    %v47 = vld [vmem:[%s0 + $0x60] sm:$0xff]
    %v48 = vld [vmem:[%s0 + $0x68] sm:$0xff]
    %v49 = vld [vmem:[%s0 + $0x70] sm:$0xff]
    %v50 = vld [vmem:[%s0 + $0x78] sm:$0xff]
    %v51 = vld [vmem:[%s1] sm:$0xff]
    %v52 = vld [vmem:[%s1 + $0x8] sm:$0xff]
    %v53 = vld [vmem:[%s1 + $0x10] sm:$0xff]
    %v54 = vld [vmem:[%s1 + $0x18] sm:$0xff]
    %v55 = vld [vmem:[%s2] sm:$0x1]
    %v57 = vlaneseq
    %v58 = vshrl.u32 %v57, 7
    %v59 = vsub.s32 0, %v58
    %v60 = vrot.slane %v55, %v59
    %vm62 = vcmask 261120
    %v64 = vsel %vm62, %v35, 0
    %v67 = vsel %vm62, %v36, 0
    %v70 = vsel %vm62, %v37, 0
    %v73 = vsel %vm62, %v38, 0
    %v76 = vsel %vm62, %v39, 0
    %v79 = vsel %vm62, %v40, 0
    %v82 = vsel %vm62, %v41, 0
    %v85 = vsel %vm62, %v42, 0
    %v88 = vsel %vm62, %v43, 0
    %v91 = vsel %vm62, %v44, 0
    %v94 = vsel %vm62, %v45, 0
    %v97 = vsel %vm62, %v46, 0
    %v100 = vsel %vm62, %v47, 0
    %v103 = vsel %vm62, %v48, 0
    %v106 = vsel %vm62, %v49, 0
    %v109 = vsel %vm62, %v50, 0
    %111 = vmatprep.subr.mxu0 0.0
    %112 = vmatpush1.msra.mxu0 0.0
    %113 = vmatprep.subr.mxu0 0.0
    %114 = vmatpush1.msra.mxu0 0.0
    %115 = vmatprep.subr.mxu0 0.0
    %116 = vmatpush1.msra.mxu0 0.0
    %117 = vmatprep.subr.mxu0 0.0
    %118 = vmatpush1.msra.mxu0 0.0
    %119 = vmatprep.subr.mxu0 0.0
    %120 = vmatpush1.msra.mxu0 0.0
    %121 = vmatprep.subr.mxu0 0.0
    %122 = vmatpush1.msra.mxu0 0.0
    %123 = vmatprep.subr.mxu0 0.0
    %124 = vmatpush1.msra.mxu0 0.0
    %125 = vmatprep.subr.mxu0 0.0
    %126 = vmatpush1.msra.mxu0 0.0
    %127 = vmatprep.subr.mxu0 0.0
    %128 = vmatpush1.msra.mxu0 0.0
    %129 = vmatprep.subr.mxu0 0.0
    %130 = vmatpush1.msra.mxu0 0.0
    %131 = vmatprep.subr.mxu0 0.0
    %132 = vmatpush1.msra.mxu0 0.0
    %133 = vmatprep.subr.mxu0 0.0
    %134 = vmatpush1.msra.mxu0 0.0
    %135 = vmatprep.subr.mxu0 0.0
    %136 = vmatpush1.msra.mxu0 %v54
    %137 = vmatprep.subr.mxu0 0.0
    %138 = vmatpush1.msra.mxu0 %v53
    %139 = vmatprep.subr.mxu0 0.0
    %140 = vmatpush1.msra.mxu0 %v52
    %141 = vmatprep.subr.mxu0 0.0
    %142 = vmatpush1.msra.mxu0 %v51
    %143 = vmatprep.subr.mxu0 0.0
    %144 = vmatpush2.msra.mxu0 0.0
    %145 = vmatprep.subr.mxu0 0.0
    %146 = vmatpush2.msra.mxu0 0.0
    %147 = vmatprep.subr.mxu0 0.0
    %148 = vmatpush2.msra.mxu0 0.0
    %149 = vmatprep.subr.mxu0 0.0
    %150 = vmatpush2.msra.mxu0 0.0
    %151 = vmatprep.subr.mxu0 0.0
    %152 = vmatpush2.msra.mxu0 0.0
    %153 = vmatprep.subr.mxu0 0.0
    %154 = vmatpush2.msra.mxu0 0.0
    %155 = vmatprep.subr.mxu0 0.0
    %156 = vmatpush2.msra.mxu0 0.0
    %157 = vmatprep.subr.mxu0 0.0
    %158 = vmatpush2.msra.mxu0 0.0
    %159 = vmatprep.subr.mxu0 0.0
    %160 = vmatpush2.msra.mxu0 0.0
    %161 = vmatprep.subr.mxu0 0.0
    %162 = vmatpush2.msra.mxu0 0.0
    %163 = vmatprep.subr.mxu0 0.0
    %164 = vmatpush2.msra.mxu0 0.0
    %165 = vmatprep.subr.mxu0 0.0
    %166 = vmatpush2.msra.mxu0 0.0
    %167 = vmatprep.subr.mxu0 0.0
    %168 = vmatpush2.msra.mxu0 0.0
    %169 = vmatprep.subr.mxu0 0.0
    %170 = vmatpush2.msra.mxu0 0.0
    %171 = vmatprep.subr.mxu0 0.0
    %172 = vmatpush2.msra.mxu0 0.0
    %173 = vmatprep.subr.mxu0 0.0
    %174 = vmatpush2.msra.mxu0 0.0
    %175 = vmatprep.mubr.f32.mxu0 0.0
    %176 = vmatmul.mubr.f32.gmra.mxu0 %v64
    %v177 = vpop.f32.mrf.mxu0
    %v178 = vadd.f32 %v60, %v177
    %v179 = vpop.f32.mrf.mxu0
    %180 = vmatprep.mubr.f32.mxu0 0.0
    %181 = vmatmul.mubr.f32.gmra.mxu0 %v67
    %v182 = vpop.f32.mrf.mxu0
    %v183 = vadd.f32 %v60, %v182
    %v184 = vpop.f32.mrf.mxu0
    %185 = vmatprep.mubr.f32.mxu0 0.0
    %186 = vmatmul.mubr.f32.gmra.mxu0 %v70
    %v187 = vpop.f32.mrf.mxu0
    %v188 = vadd.f32 %v60, %v187
    %v189 = vpop.f32.mrf.mxu0
    %190 = vmatprep.mubr.f32.mxu0 0.0
    %191 = vmatmul.mubr.f32.gmra.mxu0 %v73
    %v192 = vpop.f32.mrf.mxu0
    %v193 = vadd.f32 %v60, %v192
    %v194 = vpop.f32.mrf.mxu0
    %195 = vmatprep.mubr.f32.mxu0 0.0
    %196 = vmatmul.mubr.f32.gmra.mxu0 %v76
    %v197 = vpop.f32.mrf.mxu0
    %v198 = vadd.f32 %v60, %v197
    %v199 = vpop.f32.mrf.mxu0
    %200 = vmatprep.mubr.f32.mxu0 0.0
    %201 = vmatmul.mubr.f32.gmra.mxu0 %v79
    %v202 = vpop.f32.mrf.mxu0
    %v203 = vadd.f32 %v60, %v202
    %v204 = vpop.f32.mrf.mxu0
    %205 = vmatprep.mubr.f32.mxu0 0.0
    %206 = vmatmul.mubr.f32.gmra.mxu0 %v82
    %v207 = vpop.f32.mrf.mxu0
    %v208 = vadd.f32 %v60, %v207
    %v209 = vpop.f32.mrf.mxu0
    %210 = vmatprep.mubr.f32.mxu0 0.0
    %211 = vmatmul.mubr.f32.gmra.mxu0 %v85
    %v212 = vpop.f32.mrf.mxu0
    %v213 = vadd.f32 %v60, %v212
    %v214 = vpop.f32.mrf.mxu0
    %215 = vmatprep.mubr.f32.mxu0 0.0
    %216 = vmatmul.mubr.f32.gmra.mxu0 %v88
    %v217 = vpop.f32.mrf.mxu0
    %v218 = vadd.f32 %v60, %v217
    %v219 = vpop.f32.mrf.mxu0
    %220 = vmatprep.mubr.f32.mxu0 0.0
    %221 = vmatmul.mubr.f32.gmra.mxu0 %v91
    %v222 = vpop.f32.mrf.mxu0
    %v223 = vadd.f32 %v60, %v222
    %v224 = vpop.f32.mrf.mxu0
    %225 = vmatprep.mubr.f32.mxu0 0.0
    %226 = vmatmul.mubr.f32.gmra.mxu0 %v94
    %v227 = vpop.f32.mrf.mxu0
    %v228 = vadd.f32 %v60, %v227
    %v229 = vpop.f32.mrf.mxu0
    %230 = vmatprep.mubr.f32.mxu0 0.0
    %231 = vmatmul.mubr.f32.gmra.mxu0 %v97
    %v232 = vpop.f32.mrf.mxu0
    %v233 = vadd.f32 %v60, %v232
    %v234 = vpop.f32.mrf.mxu0
    %235 = vmatprep.mubr.f32.mxu0 0.0
    %236 = vmatmul.mubr.f32.gmra.mxu0 %v100
    %v237 = vpop.f32.mrf.mxu0
    %v238 = vadd.f32 %v60, %v237
    %v239 = vpop.f32.mrf.mxu0
    %240 = vmatprep.mubr.f32.mxu0 0.0
    %241 = vmatmul.mubr.f32.gmra.mxu0 %v103
    %v242 = vpop.f32.mrf.mxu0
    %v243 = vadd.f32 %v60, %v242
    %v244 = vpop.f32.mrf.mxu0
    %245 = vmatprep.mubr.f32.mxu0 0.0
    %246 = vmatmul.mubr.f32.gmra.mxu0 %v106
    %v247 = vpop.f32.mrf.mxu0
    %v248 = vadd.f32 %v60, %v247
    %v249 = vpop.f32.mrf.mxu0
    %250 = vmatprep.mubr.f32.mxu0 0.0
    %251 = vmatmul.mubr.f32.gmra.mxu0 %v109
    %v252 = vpop.f32.mrf.mxu0
    %v253 = vadd.f32 %v60, %v252
    %v254 = vpop.f32.mrf.mxu0
    %255 = vdwg.mxu0
    %v256 = vmax.f32 %v178, 0.0
    %v257 = vmax.f32 %v183, 0.0
    %v258 = vmax.f32 %v188, 0.0
    %v259 = vmax.f32 %v193, 0.0
    %v260 = vmax.f32 %v198, 0.0
    %v261 = vmax.f32 %v203, 0.0
    %v262 = vmax.f32 %v208, 0.0
    %v263 = vmax.f32 %v213, 0.0
    %v264 = vmax.f32 %v218, 0.0
    %v265 = vmax.f32 %v223, 0.0
    %v266 = vmax.f32 %v228, 0.0
    %v267 = vmax.f32 %v233, 0.0
    %v268 = vmax.f32 %v238, 0.0
    %v269 = vmax.f32 %v243, 0.0
    %v270 = vmax.f32 %v248, 0.0
    %v271 = vmax.f32 %v253, 0.0
    %v272 = vld [vmem:[%s3] sm:$0xff]
    %v273 = vld [vmem:[%s4] sm:$0xff]
    %275 = vset.pattern.permute.xlu0 0
    %276 = vperm.xlu0 %275, %v273
    %v277 = vpop.permute.xlu0 %276
    %279 = vmatprep.subr.mxu0 0.0
    %280 = vmatpush1.xpose.msra.mxu0 %v271
    %281 = vmatprep.subr.mxu0 0.0
    %282 = vmatpush1.xpose.msra.mxu0 %v270
    %283 = vmatprep.subr.mxu0 0.0
    %284 = vmatpush1.xpose.msra.mxu0 %v269
    %285 = vmatprep.subr.mxu0 0.0
    %286 = vmatpush1.xpose.msra.mxu0 %v268
    %287 = vmatprep.subr.mxu0 0.0
    %288 = vmatpush1.xpose.msra.mxu0 %v267
    %289 = vmatprep.subr.mxu0 0.0
    %290 = vmatpush1.xpose.msra.mxu0 %v266
    %291 = vmatprep.subr.mxu0 0.0
    %292 = vmatpush1.xpose.msra.mxu0 %v265
    %293 = vmatprep.subr.mxu0 0.0
    %294 = vmatpush1.xpose.msra.mxu0 %v264
    %295 = vmatprep.subr.mxu0 0.0
    %296 = vmatpush1.xpose.msra.mxu0 %v263
    %297 = vmatprep.subr.mxu0 0.0
    %298 = vmatpush1.xpose.msra.mxu0 %v262
    %299 = vmatprep.subr.mxu0 0.0
    %300 = vmatpush1.xpose.msra.mxu0 %v261
    %301 = vmatprep.subr.mxu0 0.0
    %302 = vmatpush1.xpose.msra.mxu0 %v260
    %303 = vmatprep.subr.mxu0 0.0
    %304 = vmatpush1.xpose.msra.mxu0 %v259
    %305 = vmatprep.subr.mxu0 0.0
    %306 = vmatpush1.xpose.msra.mxu0 %v258
    %307 = vmatprep.subr.mxu0 0.0
    %308 = vmatpush1.xpose.msra.mxu0 %v257
    %309 = vmatprep.subr.mxu0 0.0
    %310 = vmatpush1.xpose.msra.mxu0 %v256
    %311 = vmatprep.subr.mxu0 0.0
    %312 = vmatpush2.xpose.msra.mxu0 0.0
    %313 = vmatprep.subr.mxu0 0.0
    %314 = vmatpush2.xpose.msra.mxu0 0.0
    %315 = vmatprep.subr.mxu0 0.0
    %316 = vmatpush2.xpose.msra.mxu0 0.0
    %317 = vmatprep.subr.mxu0 0.0
    %318 = vmatpush2.xpose.msra.mxu0 0.0
    %319 = vmatprep.subr.mxu0 0.0
    %320 = vmatpush2.xpose.msra.mxu0 0.0
    %321 = vmatprep.subr.mxu0 0.0
    %322 = vmatpush2.xpose.msra.mxu0 0.0
    %323 = vmatprep.subr.mxu0 0.0
    %324 = vmatpush2.xpose.msra.mxu0 0.0
    %325 = vmatprep.subr.mxu0 0.0
    %326 = vmatpush2.xpose.msra.mxu0 0.0
    %327 = vmatprep.subr.mxu0 0.0
    %328 = vmatpush2.xpose.msra.mxu0 0.0
    %329 = vmatprep.subr.mxu0 0.0
    %330 = vmatpush2.xpose.msra.mxu0 0.0
    %331 = vmatprep.subr.mxu0 0.0
    %332 = vmatpush2.xpose.msra.mxu0 0.0
    %333 = vmatprep.subr.mxu0 0.0
    %334 = vmatpush2.xpose.msra.mxu0 0.0
    %335 = vmatprep.subr.mxu0 0.0
    %336 = vmatpush2.xpose.msra.mxu0 0.0
    %337 = vmatprep.subr.mxu0 0.0
    %338 = vmatpush2.xpose.msra.mxu0 0.0
    %339 = vmatprep.subr.mxu0 0.0
    %340 = vmatpush2.xpose.msra.mxu0 0.0
    %341 = vmatprep.subr.mxu0 0.0
    %342 = vmatpush2.xpose.msra.mxu0 0.0
    %343 = vmatprep.mubr.f32.mxu0 0.0
    %344 = vmatmul.mubr.f32.gmra.mxu0 %v272
    %v345 = vpop.f32.mrf.mxu0
    %v346 = vadd.f32 %v277, %v345
    %v347 = vpop.f32.mrf.mxu0
    %348 = vdwg.mxu0
    %v349 = vmax.f32 %v346, 0.0
    %v350 = vld [vmem:[%s5] sm:$0xff]
    %v351 = vld [vmem:[%s6] sm:$0xff]
    %353 = vset.pattern.permute.xlu0 0
    %354 = vperm.xlu0 %353, %v351
    %v355 = vpop.permute.xlu0 %354
    %vm357 = vcmask 64512
    %v359 = vsel %vm357, %v350, 0
    %361 = vmatprep.subr.mxu0 0.0
    %362 = vmatpush1.msra.mxu0 0.0
    %363 = vmatprep.subr.mxu0 0.0
    %364 = vmatpush1.msra.mxu0 0.0
    %365 = vmatprep.subr.mxu0 0.0
    %366 = vmatpush1.msra.mxu0 0.0
    %367 = vmatprep.subr.mxu0 0.0
    %368 = vmatpush1.msra.mxu0 0.0
    %369 = vmatprep.subr.mxu0 0.0
    %370 = vmatpush1.msra.mxu0 0.0
    %371 = vmatprep.subr.mxu0 0.0
    %372 = vmatpush1.msra.mxu0 0.0
    %373 = vmatprep.subr.mxu0 0.0
    %374 = vmatpush1.msra.mxu0 0.0
    %375 = vmatprep.subr.mxu0 0.0
    %376 = vmatpush1.msra.mxu0 0.0
    %377 = vmatprep.subr.mxu0 0.0
    %378 = vmatpush1.msra.mxu0 0.0
    %379 = vmatprep.subr.mxu0 0.0
    %380 = vmatpush1.msra.mxu0 0.0
    %381 = vmatprep.subr.mxu0 0.0
    %382 = vmatpush1.msra.mxu0 0.0
    %383 = vmatprep.subr.mxu0 0.0
    %384 = vmatpush1.msra.mxu0 0.0
    %385 = vmatprep.subr.mxu0 0.0
    %386 = vmatpush1.msra.mxu0 0.0
    %387 = vmatprep.subr.mxu0 0.0
    %388 = vmatpush1.msra.mxu0 0.0
    %389 = vmatprep.subr.mxu0 0.0
    %390 = vmatpush1.msra.mxu0 0.0
    %391 = vmatprep.subr.mxu0 0.0
    %392 = vmatpush1.msra.mxu0 %v349
    %393 = vmatprep.subr.mxu0 0.0
    %394 = vmatpush2.msra.mxu0 0.0
    %395 = vmatprep.subr.mxu0 0.0
    %396 = vmatpush2.msra.mxu0 0.0
    %397 = vmatprep.subr.mxu0 0.0
    %398 = vmatpush2.msra.mxu0 0.0
    %399 = vmatprep.subr.mxu0 0.0
    %400 = vmatpush2.msra.mxu0 0.0
    %401 = vmatprep.subr.mxu0 0.0
    %402 = vmatpush2.msra.mxu0 0.0
    %403 = vmatprep.subr.mxu0 0.0
    %404 = vmatpush2.msra.mxu0 0.0
    %405 = vmatprep.subr.mxu0 0.0
    %406 = vmatpush2.msra.mxu0 0.0
    %407 = vmatprep.subr.mxu0 0.0
    %408 = vmatpush2.msra.mxu0 0.0
    %409 = vmatprep.subr.mxu0 0.0
    %410 = vmatpush2.msra.mxu0 0.0
    %411 = vmatprep.subr.mxu0 0.0
    %412 = vmatpush2.msra.mxu0 0.0
    %413 = vmatprep.subr.mxu0 0.0
    %414 = vmatpush2.msra.mxu0 0.0
    %415 = vmatprep.subr.mxu0 0.0
    %416 = vmatpush2.msra.mxu0 0.0
    %417 = vmatprep.subr.mxu0 0.0
    %418 = vmatpush2.msra.mxu0 0.0
    %419 = vmatprep.subr.mxu0 0.0
    %420 = vmatpush2.msra.mxu0 0.0
    %421 = vmatprep.subr.mxu0 0.0
    %422 = vmatpush2.msra.mxu0 0.0
    %423 = vmatprep.subr.mxu0 0.0
    %424 = vmatpush2.msra.mxu0 0.0
    %425 = vmatprep.mubr.f32.mxu0 0.0
    %426 = vmatmul.mubr.f32.gmra.mxu0 %v359
    %v427 = vpop.f32.mrf.mxu0
    %v428 = vadd.f32 %v355, %v427
    %v429 = vpop.f32.mrf.mxu0
    %430 = vdwg.mxu0
    %v431 = vmax.f32 %v428, 0.0
    %v432 = vld [vmem:[%s7] sm:$0x1]
    %v433 = vld [vmem:[#allocation2] sm:$0x1]
    %435 = vset.pattern.permute.xlu0 0
    %436 = vperm.xlu0 %435, %v433
    %v437 = vpop.permute.xlu0 %436
    %v439 = vlaneseq
    %v440 = vshrl.u32 %v439, 7
    %v441 = vsub.s32 0, %v440
    %v442 = vrot.slane %v437, %v441
    %v444 = vsel %vm357, %v432, 0
    %446 = vmatprep.subr.mxu0 0.0
    %447 = vmatpush1.msra.mxu0 0.0
    %448 = vmatprep.subr.mxu0 0.0
    %449 = vmatpush1.msra.mxu0 0.0
    %450 = vmatprep.subr.mxu0 0.0
    %451 = vmatpush1.msra.mxu0 0.0
    %452 = vmatprep.subr.mxu0 0.0
    %453 = vmatpush1.msra.mxu0 0.0
    %454 = vmatprep.subr.mxu0 0.0
    %455 = vmatpush1.msra.mxu0 0.0
    %456 = vmatprep.subr.mxu0 0.0
    %457 = vmatpush1.msra.mxu0 0.0
    %458 = vmatprep.subr.mxu0 0.0
    %459 = vmatpush1.msra.mxu0 0.0
    %460 = vmatprep.subr.mxu0 0.0
    %461 = vmatpush1.msra.mxu0 0.0
    %462 = vmatprep.subr.mxu0 0.0
    %463 = vmatpush1.msra.mxu0 0.0
    %464 = vmatprep.subr.mxu0 0.0
    %465 = vmatpush1.msra.mxu0 0.0
    %466 = vmatprep.subr.mxu0 0.0
    %467 = vmatpush1.msra.mxu0 0.0
    %468 = vmatprep.subr.mxu0 0.0
    %469 = vmatpush1.msra.mxu0 0.0
    %470 = vmatprep.subr.mxu0 0.0
    %471 = vmatpush1.msra.mxu0 0.0
    %472 = vmatprep.subr.mxu0 0.0
    %473 = vmatpush1.msra.mxu0 0.0
    %474 = vmatprep.subr.mxu0 0.0
    %475 = vmatpush1.msra.mxu0 0.0
    %476 = vmatprep.subr.mxu0 0.0
    %477 = vmatpush1.msra.mxu0 %v431
    %478 = vmatprep.subr.mxu0 0.0
    %479 = vmatpush2.msra.mxu0 0.0
    %480 = vmatprep.subr.mxu0 0.0
    %481 = vmatpush2.msra.mxu0 0.0
    %482 = vmatprep.subr.mxu0 0.0
    %483 = vmatpush2.msra.mxu0 0.0
    %484 = vmatprep.subr.mxu0 0.0
    %485 = vmatpush2.msra.mxu0 0.0
    %486 = vmatprep.subr.mxu0 0.0
    %487 = vmatpush2.msra.mxu0 0.0
    %488 = vmatprep.subr.mxu0 0.0
    %489 = vmatpush2.msra.mxu0 0.0
    %490 = vmatprep.subr.mxu0 0.0
    %491 = vmatpush2.msra.mxu0 0.0
    %492 = vmatprep.subr.mxu0 0.0
    %493 = vmatpush2.msra.mxu0 0.0
    %494 = vmatprep.subr.mxu0 0.0
    %495 = vmatpush2.msra.mxu0 0.0
    %496 = vmatprep.subr.mxu0 0.0
    %497 = vmatpush2.msra.mxu0 0.0
    %498 = vmatprep.subr.mxu0 0.0
    %499 = vmatpush2.msra.mxu0 0.0
    %500 = vmatprep.subr.mxu0 0.0
    %501 = vmatpush2.msra.mxu0 0.0
    %502 = vmatprep.subr.mxu0 0.0
    %503 = vmatpush2.msra.mxu0 0.0
    %504 = vmatprep.subr.mxu0 0.0
    %505 = vmatpush2.msra.mxu0 0.0
    %506 = vmatprep.subr.mxu0 0.0
    %507 = vmatpush2.msra.mxu0 0.0
    %508 = vmatprep.subr.mxu0 0.0
    %509 = vmatpush2.msra.mxu0 0.0
    %510 = vmatprep.mubr.f32.mxu0 0.0
    %511 = vmatmul.mubr.f32.gmra.mxu0 %v444
    %v512 = vpop.f32.mrf.mxu0
    %v513 = vadd.f32 %v442, %v512
    %v514 = vpop.f32.mrf.mxu0
    %515 = vdwg.mxu0
    %516 = vst [vmem:[#allocation3] sm:$0x1] %v513
    // Predicated region
    $region38: #{fire_alarm_classifier.1} parent=1 // pred_check
      _
    $region39: #{fire_alarm_classifier.1} parent=1 // pred_check_branch
      %518 = sbr.rel (0) target = $region41
    $region40: #{fire_alarm_classifier.1} parent=1 // pred_region
      %s520 = ssub.s32 16, 16
      %521 = vsyncadd [#allocation4], %s520
      %s523 = sshll.u32 [#allocation3], 4
      %s524 = int_to_ptr.vmem [resolvable:$true] %s523
      %526 = dma.vmem_to_hbm [thread:$0]  %s524, 16, %s9, [#allocation4]
    $region41: #{fire_alarm_classifier.1} parent=1 // pred_fallthru
      _
    // Predicated region
    $region42: #{fire_alarm_classifier.1} parent=1 // pred_check
      _
    $region43: #{fire_alarm_classifier.1} parent=1 // pred_check_branch
      %528 = sbr.rel (0) target = $region45
    $region44: #{fire_alarm_classifier.1} parent=1 // pred_region
      %529 = dma.done [#allocation4], 16
    $region45: #{fire_alarm_classifier.1} parent=1 // pred_fallthru
      _
    %530 = vsyncpa [#allocation4], 1

</llo_original>
